<compile_context>
chip_gen: v7x
topology: tpu7x:2x2x1
jax: 0.10.0
libtpu: 0.0.40
codegen_flags: <defaults>
</compile_context>

<pallas_src>
import functools

import jax
import jax.numpy as jnp
from jax.experimental import pallas as pl
from jax.experimental.pallas import tpu as pltpu


OUT_LANES = 128   # lane-dense final store; real out_dim is sliced on the host


# ----------------------------------------------------------------------------
# Fused Pallas kernel
# ----------------------------------------------------------------------------
def _deepeik_fused_kernel(x_ref, kg_ref, tx_ref,
                          wc_ref, bc_ref, wf_ref, bf_ref,
                          wt_ref, bt_ref, w1_ref, b1_ref, w2_ref, b2_ref,
                          o_ref, *, B, L, Lo, Ds, P):
    """CNN structure encoder + text_project + pred_head, fully fused."""
    # ---- conv1d: ONE (B*L, K*V) x (K*V, C) MXU contraction ------------------
    y = jnp.maximum(
        jnp.dot(x_ref[...], wc_ref[...], preferred_element_type=jnp.float32)
        + bc_ref[...], 0.0)                              # (B*L, C), post-ReLU

    C = y.shape[1]
    y = y.reshape(B, L, C)                               # L % 8 == 0 -> aligned
    # Positions >= Lo straddle a batch boundary / padding; ReLU output >= 0 so
    # masking to 0 leaves the per-batch global max-pool unchanged.
    valid = jax.lax.broadcasted_iota(jnp.int32, (B, L, 1), 1) < Lo
    pooled = jnp.max(jnp.where(valid, y, 0.0), axis=1)   # (B, C)

    h_struct = (jnp.dot(pooled, wf_ref[...], preferred_element_type=jnp.float32)
                + bf_ref[...])                           # (B, Ds)

    # ---- text_project (Dropout == identity at inference) --------------------
    h_text = (jnp.dot(tx_ref[...], wt_ref[...], preferred_element_type=jnp.float32)
              + bt_ref[...])                             # (B, P)

    # ---- pred_head Linear1 as three row-block matmuls (no lane concat) ------
    # Row offsets Ds (=32) and Ds+P (=48) are multiples of 8 -> sublane-aligned
    z = (jnp.dot(h_struct, w1_ref[0:Ds, :], preferred_element_type=jnp.float32)
         + jnp.dot(kg_ref[...], w1_ref[Ds:Ds + P, :],
                   preferred_element_type=jnp.float32)
         + jnp.dot(h_text, w1_ref[Ds + P:Ds + 2 * P, :],
                   preferred_element_type=jnp.float32)
         + b1_ref[...])
    z = jnp.maximum(z, 0.0)                              # (B, H)

    # ---- pred_head Linear2 -> lane-dense (B, 128) store ---------------------
    o_ref[...] = (jnp.dot(z, w2_ref[...], preferred_element_type=jnp.float32)
                  + b2_ref[...])


# ----------------------------------------------------------------------------
# One-time parameter preparation (hoisted out of the per-call forward path)
# ----------------------------------------------------------------------------
def prepare_params(raw_params, out_lanes=OUT_LANES):
    p = dict(raw_params)
    out_dim = raw_params['w2'].shape[1]
    p['out_dim'] = out_dim
    p['w2_padded'] = jnp.pad(raw_params['w2'],
                             ((0, 0), (0, out_lanes - out_dim)))
    p['b2_padded'] = jnp.pad(raw_params['b2'],
                             ((0, 0), (0, out_lanes - out_dim)))
    return p


# ----------------------------------------------------------------------------
# Wrapper
# ----------------------------------------------------------------------------
def _full_spec(shape):
    # single grid step, block == full array (exempt from the (8,128) rule)
    return pl.BlockSpec(shape, lambda i: (0,) * len(shape))


def deepeik4dp_forward(params, drug):
    """Pallas implementation of DeepEIK4DP.forward (use_attention=False)."""
    structure = drug['structure']            # (B, L, V)
    h_kg = drug['kg']                        # (B, P)  (used raw, as in source)
    h_text_raw = drug['text']                # (B, T)  (text_encoder is None)

    B, L, V = structure.shape
    K = params['conv_kernel']
    Lo = L - K + 1
    assert L % 8 == 0, "L must be a multiple of 8 for the aligned (B,L,C) reshape"
    assert Lo >= 1, "conv kernel larger than sequence"
    C = params['w_conv'].shape[1]
    Ds = params['w_fc'].shape[1]
    T, P = params['w_text'].shape
    H = params['w1'].shape[1]
    out_dim = params['out_dim']

    # Lane-dim im2col: (B*L, K*V) with K*V <= 128 lanes -> one MXU contraction
    # inside the kernel.  Cost here: ~B*L*K*V*4 bytes (a few KB).
    BL = B * L
    x_flat = jnp.pad(structure.reshape(BL, V), ((0, K - 1), (0, 0)))
    x_cols = jnp.concatenate([x_flat[k:k + BL, :] for k in range(K)], axis=1)

    args = (x_cols, h_kg, h_text_raw,
            params['w_conv'], params['b_conv'], params['w_fc'], params['b_fc'],
            params['w_text'], params['b_text'], params['w1'], params['b1'],
            params['w2_padded'], params['b2_padded'])

    out_shape = jax.ShapeDtypeStruct((B, OUT_LANES), jnp.float32)

    flops = 2 * B * (L * K * V * C + C * Ds + T * P + (Ds + 2 * P) * H
                     + H * OUT_LANES)
    bytes_accessed = (sum(int(a.size) * a.dtype.itemsize for a in args)
                      + B * OUT_LANES * 4)

    out_padded = pl.pallas_call(
        functools.partial(_deepeik_fused_kernel,
                          B=B, L=L, Lo=Lo, Ds=Ds, P=P),
        grid=(1,),
        in_specs=[_full_spec(a.shape) for a in args],
        out_specs=_full_spec(out_shape.shape),
        out_shape=out_shape,
        compiler_params=pltpu.CompilerParams(
            dimension_semantics=("arbitrary",)),
        cost_estimate=pl.CostEstimate(flops=flops, transcendentals=0,
                                      bytes_accessed=bytes_accessed),
    )(*args)
    return out_padded[:, :out_dim]


# ----------------------------------------------------------------------------
# Pure-JAX reference (for correctness check)
# ----------------------------------------------------------------------------
def im2col_1d(x, k):
    """(B, L, V) -> (B, L-k+1, k*V) sliding windows (reference only)."""
    B, L, V = x.shape
    Lo = L - k + 1
    cols = jnp.stack([x[:, i:i + Lo, :] for i in range(k)], axis=2)  # (B,Lo,k,V)
    return cols.reshape(B, Lo, k * V)


def reference_forward(params, drug):
    structure, h_kg, text = drug['structure'], drug['kg'], drug['text']
    K = params['conv_kernel']
    x_unf = im2col_1d(structure, K)                                   # (B,Lo,K*V)
    y = jax.nn.relu(jnp.einsum('blv,vc->blc', x_unf, params['w_conv'])
                    + params['b_conv'])
    h_struct = jnp.max(y, axis=1) @ params['w_fc'] + params['b_fc']
    h_text = text @ params['w_text'] + params['b_text']
    h = jnp.concatenate([h_struct, h_kg, h_text], axis=1)
    z = jax.nn.relu(h @ params['w1'] + params['b1'])
    return z @ params['w2'] + params['b2']


# ----------------------------------------------------------------------------
# Main
# ----------------------------------------------------------------------------
if __name__ == "__main__":
    # config-implied dims (small synthetic sizes; L is a multiple of 8)
    B = 2            # batch
    L, V = 16, 8     # SMILES one-hot length / vocab
    K, C = 3, 32     # conv kernel / channels
    Ds = 32          # drug_structure_encoder.output_dim
    P = 16           # projection_dim (== kg embedding_dim, since kg used raw)
    T = 32           # text_dim
    H = 32           # pred_head hidden_size = [32]
    out_dim = 4

    key = jax.random.PRNGKey(0)
    ks = jax.random.split(key, 12)
    scale = 0.1
    raw_params = {
        'conv_kernel': K,
        'w_conv':  scale * jax.random.normal(ks[0], (K * V, C), jnp.float32),
        'b_conv':  scale * jax.random.normal(ks[1], (1, C), jnp.float32),
        'w_fc':    scale * jax.random.normal(ks[2], (C, Ds), jnp.float32),
        'b_fc':    scale * jax.random.normal(ks[3], (1, Ds), jnp.float32),
        'w_text':  scale * jax.random.normal(ks[4], (T, P), jnp.float32),
        'b_text':  scale * jax.random.normal(ks[5], (1, P), jnp.float32),
        # pred_head Linear1: single fused (Ds + 2P, H) weight (as in PyTorch)
        'w1':      scale * jax.random.normal(ks[6], (Ds + 2 * P, H), jnp.float32),
        'b1':      scale * jax.random.normal(ks[9], (1, H), jnp.float32),
        'w2':      scale * jax.random.normal(ks[10], (H, out_dim), jnp.float32),
        'b2':      scale * jax.random.normal(ks[11], (1, out_dim), jnp.float32),
    }
    params = prepare_params(raw_params)      # one-time padding, off the fwd path

    dkeys = jax.random.split(jax.random.PRNGKey(1), 3)
    drug = {
        'structure': jax.random.uniform(dkeys[0], (B, L, V), jnp.float32),
        'kg':        jax.random.normal(dkeys[1], (B, P), jnp.float32),
        'text':      jax.random.normal(dkeys[2], (B, T), jnp.float32),
    }

    out = jax.block_until_ready(deepeik4dp_forward(params, drug))
    ref = jax.block_until_ready(reference_forward(params, drug))

    assert out.shape == (B, out_dim), out.shape
    assert jnp.allclose(out, ref, atol=1e-4, rtol=1e-4), (out, ref)
    print("KERNEL_OK")
</pallas_src>

<mosaic_0001>
module attributes {stable_mosaic.version = 11 : i64} {
  func.func @_deepeik_fused_kernel(%arg0: i32, %arg1: memref<32x24xf32, #tpu.memory_space<vmem>>, %arg2: memref<2x16xf32, #tpu.memory_space<vmem>>, %arg3: memref<2x32xf32, #tpu.memory_space<vmem>>, %arg4: memref<24x32xf32, #tpu.memory_space<vmem>>, %arg5: memref<1x32xf32, #tpu.memory_space<vmem>>, %arg6: memref<32x32xf32, #tpu.memory_space<vmem>>, %arg7: memref<1x32xf32, #tpu.memory_space<vmem>>, %arg8: memref<32x16xf32, #tpu.memory_space<vmem>>, %arg9: memref<1x16xf32, #tpu.memory_space<vmem>>, %arg10: memref<64x32xf32, #tpu.memory_space<vmem>>, %arg11: memref<1x32xf32, #tpu.memory_space<vmem>>, %arg12: memref<32x128xf32, #tpu.memory_space<vmem>>, %arg13: memref<1x128xf32, #tpu.memory_space<vmem>>, %arg14: memref<2x128xf32, #tpu.memory_space<vmem>>) attributes {dimension_semantics = [#tpu.dimension_semantics<arbitrary>], iteration_bounds = array<i64: 1>, scalar_prefetch = 0 : i64, scratch_operands = 0 : i64, tpu.core_type = #tpu.core_type<tc>, window_params = [{pipeline_mode = #tpu.pipeline_mode<synchronous>, transform_indices = @transform_0, window_bounds = array<i64: 32, 24>}, {pipeline_mode = #tpu.pipeline_mode<synchronous>, transform_indices = @transform_1, window_bounds = array<i64: 2, 16>}, {pipeline_mode = #tpu.pipeline_mode<synchronous>, transform_indices = @transform_2, window_bounds = array<i64: 2, 32>}, {pipeline_mode = #tpu.pipeline_mode<synchronous>, transform_indices = @transform_3, window_bounds = array<i64: 24, 32>}, {pipeline_mode = #tpu.pipeline_mode<synchronous>, transform_indices = @transform_4, window_bounds = array<i64: 1, 32>}, {pipeline_mode = #tpu.pipeline_mode<synchronous>, transform_indices = @transform_5, window_bounds = array<i64: 32, 32>}, {pipeline_mode = #tpu.pipeline_mode<synchronous>, transform_indices = @transform_6, window_bounds = array<i64: 1, 32>}, {pipeline_mode = #tpu.pipeline_mode<synchronous>, transform_indices = @transform_7, window_bounds = array<i64: 32, 16>}, {pipeline_mode = #tpu.pipeline_mode<synchronous>, transform_indices = @transform_8, window_bounds = array<i64: 1, 16>}, {pipeline_mode = #tpu.pipeline_mode<synchronous>, transform_indices = @transform_9, window_bounds = array<i64: 64, 32>}, {pipeline_mode = #tpu.pipeline_mode<synchronous>, transform_indices = @transform_10, window_bounds = array<i64: 1, 32>}, {pipeline_mode = #tpu.pipeline_mode<synchronous>, transform_indices = @transform_11, window_bounds = array<i64: 32, 128>}, {pipeline_mode = #tpu.pipeline_mode<synchronous>, transform_indices = @transform_12, window_bounds = array<i64: 1, 128>}, {pipeline_mode = #tpu.pipeline_mode<synchronous>, transform_indices = @transform_13, window_bounds = array<i64: 2, 128>}]} {
    %c0 = arith.constant 0 : index
    %c0_0 = arith.constant 0 : index
    %0 = vector.load %arg1[%c0, %c0_0] : memref<32x24xf32, #tpu.memory_space<vmem>>, vector<32x24xf32>
    %c0_1 = arith.constant 0 : index
    %c0_2 = arith.constant 0 : index
    %1 = vector.load %arg4[%c0_1, %c0_2] : memref<24x32xf32, #tpu.memory_space<vmem>>, vector<24x32xf32>
    %cst = arith.constant dense<0.000000e+00> : vector<32x32xf32>
    %2 = tpu.matmul %0, %1, %cst {dimension_numbers = #tpu.dot_dimension_numbers<[1], [0], [0], [1], [0, 0, 1, 1], [], []>} : vector<32x24xf32>, vector<24x32xf32>, vector<32x32xf32> -> vector<32x32xf32>
    %c0_3 = arith.constant 0 : index
    %c0_4 = arith.constant 0 : index
    %3 = vector.load %arg5[%c0_3, %c0_4] : memref<1x32xf32, #tpu.memory_space<vmem>>, vector<1x32xf32>
    %4 = vector.broadcast %3 : vector<1x32xf32> to vector<32x32xf32>
    %5 = arith.addf %2, %4 : vector<32x32xf32>
    %cst_5 = arith.constant 0.000000e+00 : f32
    %6 = vector.broadcast %cst_5 : f32 to vector<32x32xf32>
    %7 = arith.maximumf %5, %6 : vector<32x32xf32>
    %8 = vector.shape_cast %7 : vector<32x32xf32> to vector<2x16x32xf32>
    %9 = tpu.iota {dimensions = array<i32: 1>} : vector<2x16x1xi32>
    %c14_i32 = arith.constant 14 : i32
    %10 = vector.broadcast %c14_i32 : i32 to vector<2x16x1xi32>
    %11 = arith.cmpi slt, %9, %10 : vector<2x16x1xi32>
    %cst_6 = arith.constant 0.000000e+00 : f32
    %12 = vector.shape_cast %11 : vector<2x16x1xi1> to vector<2x16x1xi1>
    %13 = vector.broadcast %12 : vector<2x16x1xi1> to vector<2x16x32xi1>
    %14 = vector.broadcast %cst_6 : f32 to vector<2x16x32xf32>
    %15 = arith.select %13, %8, %14 : vector<2x16x32xi1>, vector<2x16x32xf32>
    %cst_7 = arith.constant dense<0xFF800000> : vector<2x32xf32>
    %16 = vector.multi_reduction <maximumf>, %15, %cst_7 [1] : vector<2x16x32xf32> to vector<2x32xf32>
    %c0_8 = arith.constant 0 : index
    %c0_9 = arith.constant 0 : index
    %17 = vector.load %arg6[%c0_8, %c0_9] : memref<32x32xf32, #tpu.memory_space<vmem>>, vector<32x32xf32>
    %cst_10 = arith.constant dense<0.000000e+00> : vector<2x32xf32>
    %18 = tpu.matmul %16, %17, %cst_10 {dimension_numbers = #tpu.dot_dimension_numbers<[1], [0], [0], [1], [0, 0, 1, 1], [], []>} : vector<2x32xf32>, vector<32x32xf32>, vector<2x32xf32> -> vector<2x32xf32>
    %c0_11 = arith.constant 0 : index
    %c0_12 = arith.constant 0 : index
    %19 = vector.load %arg7[%c0_11, %c0_12] : memref<1x32xf32, #tpu.memory_space<vmem>>, vector<1x32xf32>
    %20 = vector.broadcast %19 : vector<1x32xf32> to vector<2x32xf32>
    %21 = arith.addf %18, %20 : vector<2x32xf32>
    %c0_13 = arith.constant 0 : index
    %c0_14 = arith.constant 0 : index
    %22 = vector.load %arg3[%c0_13, %c0_14] : memref<2x32xf32, #tpu.memory_space<vmem>>, vector<2x32xf32>
    %c0_15 = arith.constant 0 : index
    %c0_16 = arith.constant 0 : index
    %23 = vector.load %arg8[%c0_15, %c0_16] : memref<32x16xf32, #tpu.memory_space<vmem>>, vector<32x16xf32>
    %cst_17 = arith.constant dense<0.000000e+00> : vector<2x16xf32>
    %24 = tpu.matmul %22, %23, %cst_17 {dimension_numbers = #tpu.dot_dimension_numbers<[1], [0], [0], [1], [0, 0, 1, 1], [], []>} : vector<2x32xf32>, vector<32x16xf32>, vector<2x16xf32> -> vector<2x16xf32>
    %c0_18 = arith.constant 0 : index
    %c0_19 = arith.constant 0 : index
    %25 = vector.load %arg9[%c0_18, %c0_19] : memref<1x16xf32, #tpu.memory_space<vmem>>, vector<1x16xf32>
    %26 = vector.broadcast %25 : vector<1x16xf32> to vector<2x16xf32>
    %27 = arith.addf %24, %26 : vector<2x16xf32>
    %c0_20 = arith.constant 0 : index
    %c0_21 = arith.constant 0 : index
    %28 = vector.load %arg10[%c0_20, %c0_21] : memref<64x32xf32, #tpu.memory_space<vmem>>, vector<32x32xf32>
    %cst_22 = arith.constant dense<0.000000e+00> : vector<2x32xf32>
    %29 = tpu.matmul %21, %28, %cst_22 {dimension_numbers = #tpu.dot_dimension_numbers<[1], [0], [0], [1], [0, 0, 1, 1], [], []>} : vector<2x32xf32>, vector<32x32xf32>, vector<2x32xf32> -> vector<2x32xf32>
    %c0_23 = arith.constant 0 : index
    %c0_24 = arith.constant 0 : index
    %30 = vector.load %arg2[%c0_23, %c0_24] : memref<2x16xf32, #tpu.memory_space<vmem>>, vector<2x16xf32>
    %c32 = arith.constant 32 : index
    %c0_25 = arith.constant 0 : index
    %31 = vector.load %arg10[%c32, %c0_25] : memref<64x32xf32, #tpu.memory_space<vmem>>, vector<16x32xf32>
    %cst_26 = arith.constant dense<0.000000e+00> : vector<2x32xf32>
    %32 = tpu.matmul %30, %31, %cst_26 {dimension_numbers = #tpu.dot_dimension_numbers<[1], [0], [0], [1], [0, 0, 1, 1], [], []>} : vector<2x16xf32>, vector<16x32xf32>, vector<2x32xf32> -> vector<2x32xf32>
    %33 = arith.addf %29, %32 : vector<2x32xf32>
    %c48 = arith.constant 48 : index
    %c0_27 = arith.constant 0 : index
    %34 = vector.load %arg10[%c48, %c0_27] : memref<64x32xf32, #tpu.memory_space<vmem>>, vector<16x32xf32>
    %cst_28 = arith.constant dense<0.000000e+00> : vector<2x32xf32>
    %35 = tpu.matmul %27, %34, %cst_28 {dimension_numbers = #tpu.dot_dimension_numbers<[1], [0], [0], [1], [0, 0, 1, 1], [], []>} : vector<2x16xf32>, vector<16x32xf32>, vector<2x32xf32> -> vector<2x32xf32>
    %36 = arith.addf %33, %35 : vector<2x32xf32>
    %c0_29 = arith.constant 0 : index
    %c0_30 = arith.constant 0 : index
    %37 = vector.load %arg11[%c0_29, %c0_30] : memref<1x32xf32, #tpu.memory_space<vmem>>, vector<1x32xf32>
    %38 = vector.broadcast %37 : vector<1x32xf32> to vector<2x32xf32>
    %39 = arith.addf %36, %38 : vector<2x32xf32>
    %cst_31 = arith.constant 0.000000e+00 : f32
    %40 = vector.broadcast %cst_31 : f32 to vector<2x32xf32>
    %41 = arith.maximumf %39, %40 : vector<2x32xf32>
    %c0_32 = arith.constant 0 : index
    %c0_33 = arith.constant 0 : index
    %42 = vector.load %arg12[%c0_32, %c0_33] : memref<32x128xf32, #tpu.memory_space<vmem>>, vector<32x128xf32>
    %cst_34 = arith.constant dense<0.000000e+00> : vector<2x128xf32>
    %43 = tpu.matmul %41, %42, %cst_34 {dimension_numbers = #tpu.dot_dimension_numbers<[1], [0], [0], [1], [0, 0, 1, 1], [], []>} : vector<2x32xf32>, vector<32x128xf32>, vector<2x128xf32> -> vector<2x128xf32>
    %c0_35 = arith.constant 0 : index
    %c0_36 = arith.constant 0 : index
    %44 = vector.load %arg13[%c0_35, %c0_36] : memref<1x128xf32, #tpu.memory_space<vmem>>, vector<1x128xf32>
    %45 = vector.broadcast %44 : vector<1x128xf32> to vector<2x128xf32>
    %46 = arith.addf %43, %45 : vector<2x128xf32>
    %c0_37 = arith.constant 0 : index
    %c0_38 = arith.constant 0 : index
    %47 = vector.load %arg14[%c0_37, %c0_38] : memref<2x128xf32, #tpu.memory_space<vmem>>, vector<2x128xf32>
    tpu.vector_store %arg14[%c0_37, %c0_38], %46 {strides = array<i32>} : memref<2x128xf32, #tpu.memory_space<vmem>>, vector<2x128xf32>,
    return
  }
  func.func @transform_0(%arg0: i32) -> (i32, i32) {
    %c0_i32 = arith.constant 0 : i32
    %c0_i32_0 = arith.constant 0 : i32
    %c0_i32_1 = arith.constant 0 : i32
    return %c0_i32, %c0_i32_0 : i32, i32
  }
  func.func @transform_1(%arg0: i32) -> (i32, i32) {
    %c0_i32 = arith.constant 0 : i32
    %c0_i32_0 = arith.constant 0 : i32
    %c0_i32_1 = arith.constant 0 : i32
    return %c0_i32, %c0_i32_0 : i32, i32
  }
  func.func @transform_2(%arg0: i32) -> (i32, i32) {
    %c0_i32 = arith.constant 0 : i32
    %c0_i32_0 = arith.constant 0 : i32
    %c0_i32_1 = arith.constant 0 : i32
    return %c0_i32, %c0_i32_0 : i32, i32
  }
  func.func @transform_3(%arg0: i32) -> (i32, i32) {
    %c0_i32 = arith.constant 0 : i32
    %c0_i32_0 = arith.constant 0 : i32
    %c0_i32_1 = arith.constant 0 : i32
    return %c0_i32, %c0_i32_0 : i32, i32
  }
  func.func @transform_4(%arg0: i32) -> (i32, i32) {
    %c0_i32 = arith.constant 0 : i32
    %c0_i32_0 = arith.constant 0 : i32
    %c0_i32_1 = arith.constant 0 : i32
    return %c0_i32, %c0_i32_0 : i32, i32
  }
  func.func @transform_5(%arg0: i32) -> (i32, i32) {
    %c0_i32 = arith.constant 0 : i32
    %c0_i32_0 = arith.constant 0 : i32
    %c0_i32_1 = arith.constant 0 : i32
    return %c0_i32, %c0_i32_0 : i32, i32
  }
  func.func @transform_6(%arg0: i32) -> (i32, i32) {
    %c0_i32 = arith.constant 0 : i32
    %c0_i32_0 = arith.constant 0 : i32
    %c0_i32_1 = arith.constant 0 : i32
    return %c0_i32, %c0_i32_0 : i32, i32
  }
  func.func @transform_7(%arg0: i32) -> (i32, i32) {
    %c0_i32 = arith.constant 0 : i32
    %c0_i32_0 = arith.constant 0 : i32
    %c0_i32_1 = arith.constant 0 : i32
    return %c0_i32, %c0_i32_0 : i32, i32
  }
  func.func @transform_8(%arg0: i32) -> (i32, i32) {
    %c0_i32 = arith.constant 0 : i32
    %c0_i32_0 = arith.constant 0 : i32
    %c0_i32_1 = arith.constant 0 : i32
    return %c0_i32, %c0_i32_0 : i32, i32
  }
  func.func @transform_9(%arg0: i32) -> (i32, i32) {
    %c0_i32 = arith.constant 0 : i32
    %c0_i32_0 = arith.constant 0 : i32
    %c0_i32_1 = arith.constant 0 : i32
    return %c0_i32, %c0_i32_0 : i32, i32
  }
  func.func @transform_10(%arg0: i32) -> (i32, i32) {
    %c0_i32 = arith.constant 0 : i32
    %c0_i32_0 = arith.constant 0 : i32
    %c0_i32_1 = arith.constant 0 : i32
    return %c0_i32, %c0_i32_0 : i32, i32
  }
  func.func @transform_11(%arg0: i32) -> (i32, i32) {
    %c0_i32 = arith.constant 0 : i32
    %c0_i32_0 = arith.constant 0 : i32
    %c0_i32_1 = arith.constant 0 : i32
    return %c0_i32, %c0_i32_0 : i32, i32
  }
  func.func @transform_12(%arg0: i32) -> (i32, i32) {
    %c0_i32 = arith.constant 0 : i32
    %c0_i32_0 = arith.constant 0 : i32
    %c0_i32_1 = arith.constant 0 : i32
    return %c0_i32, %c0_i32_0 : i32, i32
  }
  func.func @transform_13(%arg0: i32) -> (i32, i32) {
    %c0_i32 = arith.constant 0 : i32
    %c0_i32_0 = arith.constant 0 : i32
    %c0_i32_1 = arith.constant 0 : i32
    return %c0_i32, %c0_i32_0 : i32, i32
  }
}

</mosaic_0001>

<llo_original>
// kernel: tpu_custom_call.1
$region0: #{tpu_custom_call.1}
  #allocation0 [shape = 'u32[]', space=smem, size = 0x4, offset = 0x4, fixed_abs, tag = 'smem constant byte address 0x4 - core index']
  #allocation1 [shape = 'u32[144,128]{1,0:T(1,128)}', space=vmem, size = 0x12000, scoped, tag = 'internal scratch']
  %s0 = inlined_call_operand.vmem [shape: f32[32,24], index: 0, kind: input, shape index: {}]
  %s1 = inlined_call_operand.vmem [shape: f32[2,16], index: 1, kind: input, shape index: {}]
  %s2 = inlined_call_operand.vmem [shape: f32[2,32], index: 2, kind: input, shape index: {}]
  %s3 = inlined_call_operand.vmem [shape: f32[24,32], index: 3, kind: input, shape index: {}]
  %s4 = inlined_call_operand.vmem [shape: f32[1,32], index: 4, kind: input, shape index: {}]
  %s5 = inlined_call_operand.vmem [shape: f32[32,32], index: 5, kind: input, shape index: {}]
  %s6 = inlined_call_operand.vmem [shape: f32[1,32], index: 6, kind: input, shape index: {}]
  %s7 = inlined_call_operand.vmem [shape: f32[32,16], index: 7, kind: input, shape index: {}]
  %s8 = inlined_call_operand.vmem [shape: f32[1,16], index: 8, kind: input, shape index: {}]
  %s9 = inlined_call_operand.vmem [shape: f32[64,32], index: 9, kind: input, shape index: {}]
  %s10 = inlined_call_operand.vmem [shape: f32[1,32], index: 10, kind: input, shape index: {}]
  %s11 = inlined_call_operand.vmem [shape: f32[32,128], index: 11, kind: input, shape index: {}]
  %s12 = inlined_call_operand.vmem [shape: f32[1,128], index: 12, kind: input, shape index: {}]
  %s13 = inlined_call_operand.hbm [shape: f32[2,128], index: 13, kind: output, shape index: {}]
  %s14 = sld [smem:[#allocation0]]
  $region62: #{tpu_custom_call.1} parent=0
    _
  %s16 = ssub.s32 1, %s14
  %s17 = scalar_select 0, %s16, %s14
  $region1: #{tpu_custom_call.1} parent=0
    #allocation2 [shape = 'u8[1024]{0}', space=vmem, size = 0x400, scoped, tag = 'output window, operand 0, single buffered']
    #allocation3 [shape = 's32[1]{0}', space=sflag, size = 0x4, scoped, tag = 'scoped memory for tpu_custom_call.1']
    %18 = vsyncpa [#allocation3], 0
    // Predicated region
    $region2: #{tpu_custom_call.1} parent=1 // pred_check
      _
    $region3: #{tpu_custom_call.1} parent=1 // pred_check_branch
      %20 = sbr.rel (0) target = $region5
    $region4: #{tpu_custom_call.1} parent=1 // pred_region
      _
    $region5: #{tpu_custom_call.1} parent=1 // pred_fallthru
      _
    // Predicated region
    $region6: #{tpu_custom_call.1} parent=1 // pred_check
      _
    $region7: #{tpu_custom_call.1} parent=1 // pred_check_branch
      %22 = sbr.rel (0) target = $region9
    $region8: #{tpu_custom_call.1} parent=1 // pred_region
      _
    $region9: #{tpu_custom_call.1} parent=1 // pred_fallthru
      _
    // Predicated region
    $region10: #{tpu_custom_call.1} parent=1 // pred_check
      _
    $region11: #{tpu_custom_call.1} parent=1 // pred_check_branch
      %24 = sbr.rel (0) target = $region13
    $region12: #{tpu_custom_call.1} parent=1 // pred_region
      _
    $region13: #{tpu_custom_call.1} parent=1 // pred_fallthru
      _
    // Predicated region
    $region14: #{tpu_custom_call.1} parent=1 // pred_check
      _
    $region15: #{tpu_custom_call.1} parent=1 // pred_check_branch
      %26 = sbr.rel (0) target = $region17
    $region16: #{tpu_custom_call.1} parent=1 // pred_region
      _
    $region17: #{tpu_custom_call.1} parent=1 // pred_fallthru
      _
    // Predicated region
    $region18: #{tpu_custom_call.1} parent=1 // pred_check
      _
    $region19: #{tpu_custom_call.1} parent=1 // pred_check_branch
      %28 = sbr.rel (0) target = $region21
    $region20: #{tpu_custom_call.1} parent=1 // pred_region
      _
    $region21: #{tpu_custom_call.1} parent=1 // pred_fallthru
      _
    // Predicated region
    $region22: #{tpu_custom_call.1} parent=1 // pred_check
      _
    $region23: #{tpu_custom_call.1} parent=1 // pred_check_branch
      %30 = sbr.rel (0) target = $region25
    $region24: #{tpu_custom_call.1} parent=1 // pred_region
      _
    $region25: #{tpu_custom_call.1} parent=1 // pred_fallthru
      _
    // Predicated region
    $region26: #{tpu_custom_call.1} parent=1 // pred_check
      _
    $region27: #{tpu_custom_call.1} parent=1 // pred_check_branch
      %32 = sbr.rel (0) target = $region29
    $region28: #{tpu_custom_call.1} parent=1 // pred_region
      _
    $region29: #{tpu_custom_call.1} parent=1 // pred_fallthru
      _
    // Predicated region
    $region30: #{tpu_custom_call.1} parent=1 // pred_check
      _
    $region31: #{tpu_custom_call.1} parent=1 // pred_check_branch
      %34 = sbr.rel (0) target = $region33
    $region32: #{tpu_custom_call.1} parent=1 // pred_region
      _
    $region33: #{tpu_custom_call.1} parent=1 // pred_fallthru
      _
    // Predicated region
    $region34: #{tpu_custom_call.1} parent=1 // pred_check
      _
    $region35: #{tpu_custom_call.1} parent=1 // pred_check_branch
      %36 = sbr.rel (0) target = $region37
    $region36: #{tpu_custom_call.1} parent=1 // pred_region
      _
    $region37: #{tpu_custom_call.1} parent=1 // pred_fallthru
      _
    // Predicated region
    $region38: #{tpu_custom_call.1} parent=1 // pred_check
      _
    $region39: #{tpu_custom_call.1} parent=1 // pred_check_branch
      %38 = sbr.rel (0) target = $region41
    $region40: #{tpu_custom_call.1} parent=1 // pred_region
      _
    $region41: #{tpu_custom_call.1} parent=1 // pred_fallthru
      _
    // Predicated region
    $region42: #{tpu_custom_call.1} parent=1 // pred_check
      _
    $region43: #{tpu_custom_call.1} parent=1 // pred_check_branch
      %40 = sbr.rel (0) target = $region45
    $region44: #{tpu_custom_call.1} parent=1 // pred_region
      _
    $region45: #{tpu_custom_call.1} parent=1 // pred_fallthru
      _
    // Predicated region
    $region46: #{tpu_custom_call.1} parent=1 // pred_check
      _
    $region47: #{tpu_custom_call.1} parent=1 // pred_check_branch
      %42 = sbr.rel (0) target = $region49
    $region48: #{tpu_custom_call.1} parent=1 // pred_region
      _
    $region49: #{tpu_custom_call.1} parent=1 // pred_fallthru
      _
    // Predicated region
    $region50: #{tpu_custom_call.1} parent=1 // pred_check
      _
    $region51: #{tpu_custom_call.1} parent=1 // pred_check_branch
      %44 = sbr.rel (0) target = $region53
    $region52: #{tpu_custom_call.1} parent=1 // pred_region
      _
    $region53: #{tpu_custom_call.1} parent=1 // pred_fallthru
      _
    %v45 = vld [vmem:[%s0] sm:$0xff]
    %v46 = vld [vmem:[%s0 + $0x8] sm:$0xff]
    %v47 = vld [vmem:[%s0 + $0x10] sm:$0xff]
    %v48 = vld [vmem:[%s0 + $0x18] sm:$0xff]
    %v49 = vld [vmem:[%s3] sm:$0xff]
    %v50 = vld [vmem:[%s3 + $0x8] sm:$0xff]
    %v51 = vld [vmem:[%s3 + $0x10] sm:$0xff]
    %v52 = vld [vmem:[%s4] sm:$0x1]
    %v54 = vlaneseq
    %v55 = vshrl.u32 %v54, 7
    %v56 = vsub.s32 0, %v55
    %v57 = vrot.slane %v52, %v56
    %vm59 = vcmask 195584
    %v61 = vsel %vm59, %v45, 0
    %v64 = vsel %vm59, %v46, 0
    %v67 = vsel %vm59, %v47, 0
    %v70 = vsel %vm59, %v48, 0
    %72 = vmatprep.subr.mxu0 0.0
    %73 = vmatpush1.msra.mxu0 %v49
    %74 = vmatprep.subr.mxu0 0.0
    %75 = vmatpush1.msra.mxu0 %v50
    %76 = vmatprep.subr.mxu0 0.0
    %77 = vmatpush1.msra.mxu0 %v51
    %78 = vmatprep.subr.mxu0 0.0
    %79 = vmatpush1.msra.mxu0 0.0
    %80 = vmatprep.subr.mxu0 0.0
    %81 = vmatpush1.msra.mxu0 0.0
    %82 = vmatprep.subr.mxu0 0.0
    %83 = vmatpush1.msra.mxu0 0.0
    %84 = vmatprep.subr.mxu0 0.0
    %85 = vmatpush1.msra.mxu0 0.0
    %86 = vmatprep.subr.mxu0 0.0
    %87 = vmatpush1.msra.mxu0 0.0
    %88 = vmatprep.subr.mxu0 0.0
    %89 = vmatpush1.msra.mxu0 0.0
    %90 = vmatprep.subr.mxu0 0.0
    %91 = vmatpush1.msra.mxu0 0.0
    %92 = vmatprep.subr.mxu0 0.0
    %93 = vmatpush1.msra.mxu0 0.0
    %94 = vmatprep.subr.mxu0 0.0
    %95 = vmatpush1.msra.mxu0 0.0
    %96 = vmatprep.subr.mxu0 0.0
    %97 = vmatpush1.msra.mxu0 0.0
    %98 = vmatprep.subr.mxu0 0.0
    %99 = vmatpush1.msra.mxu0 0.0
    %100 = vmatprep.subr.mxu0 0.0
    %101 = vmatpush1.msra.mxu0 0.0
    %102 = vmatprep.subr.mxu0 0.0
    %103 = vmatpush1.msra.mxu0 0.0
    %104 = vmatprep.subr.mxu0 0.0
    %105 = vmatpush1.msra.mxu0 0.0
    %106 = vmatprep.subr.mxu0 0.0
    %107 = vmatpush1.msra.mxu0 0.0
    %108 = vmatprep.subr.mxu0 0.0
    %109 = vmatpush1.msra.mxu0 0.0
    %110 = vmatprep.subr.mxu0 0.0
    %111 = vmatpush1.msra.mxu0 0.0
    %112 = vmatprep.subr.mxu0 0.0
    %113 = vmatpush1.msra.mxu0 0.0
    %114 = vmatprep.subr.mxu0 0.0
    %115 = vmatpush1.msra.mxu0 0.0
    %116 = vmatprep.subr.mxu0 0.0
    %117 = vmatpush1.msra.mxu0 0.0
    %118 = vmatprep.subr.mxu0 0.0
    %119 = vmatpush1.msra.mxu0 0.0
    %120 = vmatprep.subr.mxu0 0.0
    %121 = vmatpush1.msra.mxu0 0.0
    %122 = vmatprep.subr.mxu0 0.0
    %123 = vmatpush1.msra.mxu0 0.0
    %124 = vmatprep.subr.mxu0 0.0
    %125 = vmatpush1.msra.mxu0 0.0
    %126 = vmatprep.subr.mxu0 0.0
    %127 = vmatpush1.msra.mxu0 0.0
    %128 = vmatprep.subr.mxu0 0.0
    %129 = vmatpush1.msra.mxu0 0.0
    %130 = vmatprep.subr.mxu0 0.0
    %131 = vmatpush1.msra.mxu0 0.0
    %132 = vmatprep.subr.mxu0 0.0
    %133 = vmatpush1.msra.mxu0 0.0
    %134 = vmatprep.subr.mxu0 0.0
    %135 = vmatpush1.msra.mxu0 0.0
    %136 = vmatprep.mubr.f32.mxu0 0.0
    %137 = vmatmul.mubr.f32.gmra.mrb[0].mxu0 %v61
    %v138 = vpop.f32.mrb[0].mxu0
    %v139 = vadd.f32 %v57, %v138
    %v140 = vpop.f32.mrb[0].mxu0
    %141 = vmatprep.mubr.f32.mxu0 0.0
    %142 = vmatmul.mubr.f32.gmra.mrb[0].mxu0 %v64
    %v143 = vpop.f32.mrb[0].mxu0
    %v144 = vadd.f32 %v57, %v143
    %v145 = vpop.f32.mrb[0].mxu0
    %146 = vmatprep.mubr.f32.mxu0 0.0
    %147 = vmatmul.mubr.f32.gmra.mrb[0].mxu0 %v67
    %v148 = vpop.f32.mrb[0].mxu0
    %v149 = vadd.f32 %v57, %v148
    %v150 = vpop.f32.mrb[0].mxu0
    %151 = vmatprep.mubr.f32.mxu0 0.0
    %152 = vmatmul.mubr.f32.gmra.mrb[0].mxu0 %v70
    %v153 = vpop.f32.mrb[0].mxu0
    %v154 = vadd.f32 %v57, %v153
    %v155 = vpop.f32.mrb[0].mxu0
    %156 = vdwg.mxu0
    %v157 = vmax.f32 %v139, 0.0
    %v158 = vmax.f32 %v144, 0.0
    %v159 = vmax.f32 %v149, 0.0
    %v160 = vmax.f32 %v154, 0.0
    %v161 = vlaneseq
    %v162 = vshrl.u32 %v161, 7
    %v163 = vadd.s32 %v162, 8
    %vm164 = vcmp.lt.s32.totalorder %v162, 14
    %vm165 = vcmp.lt.s32.totalorder %v163, 14
    %v166 = vsel %vm164, 1, 0
    %v167 = vsel %vm165, 1, 0
    %vm168 = vcmp.eq.s32.totalorder %v166, 1
    %vm169 = vcmp.eq.s32.totalorder %v167, 1
    %v170 = vsel %vm168, %v157, 0.0
    %v171 = vsel %vm169, %v158, 0.0
    %v172 = vsel %vm168, %v159, 0.0
    %v173 = vsel %vm169, %v160, 0.0
    %vm174 = vcmask 261120
    %v175 = vsel %vm174, %v170, -inf
    %v176 = vsel %vm174, %v171, -inf
    %v177 = vmax.f32 %v175, %v176
    %v178 = vrot.slane %v177, 4
    %v179 = vmax.f32 %v177, %v178
    %v180 = vrot.slane %v179, 2
    %v181 = vmax.f32 %v179, %v180
    %v182 = vrot.slane %v181, 1
    %v183 = vmax.f32 %v181, %v182
    %v184 = vsel %vm174, %v172, -inf
    %v185 = vsel %vm174, %v173, -inf
    %v186 = vmax.f32 %v184, %v185
    %v187 = vrot.slane %v186, 4
    %v188 = vmax.f32 %v186, %v187
    %v189 = vrot.slane %v188, 2
    %v190 = vmax.f32 %v188, %v189
    %v191 = vrot.slane %v190, 1
    %v192 = vmax.f32 %v190, %v191
    %v193 = vld [vmem:[%s5] sm:$0xff]
    %v194 = vld [vmem:[%s5 + $0x8] sm:$0xff]
    %v195 = vld [vmem:[%s5 + $0x10] sm:$0xff]
    %v196 = vld [vmem:[%s5 + $0x18] sm:$0xff]
    %v197 = vld [vmem:[%s6] sm:$0x1]
    %v199 = vlaneseq
    %v200 = vshrl.u32 %v199, 7
    %v201 = vsub.s32 0, %v200
    %v202 = vrot.slane %v197, %v201
    %vm206 = vcmask 1041409
    %v207 = vsel %vm206, %v192, %v183
    %v208 = vsel %vm174, %v207, 0
    %210 = vmatprep.subr.mxu0 0.0
    %211 = vmatpush1.msra.mxu0 %v193
    %212 = vmatprep.subr.mxu0 0.0
    %213 = vmatpush1.msra.mxu0 %v194
    %214 = vmatprep.subr.mxu0 0.0
    %215 = vmatpush1.msra.mxu0 %v195
    %216 = vmatprep.subr.mxu0 0.0
    %217 = vmatpush1.msra.mxu0 %v196
    %218 = vmatprep.subr.mxu0 0.0
    %219 = vmatpush1.msra.mxu0 0.0
    %220 = vmatprep.subr.mxu0 0.0
    %221 = vmatpush1.msra.mxu0 0.0
    %222 = vmatprep.subr.mxu0 0.0
    %223 = vmatpush1.msra.mxu0 0.0
    %224 = vmatprep.subr.mxu0 0.0
    %225 = vmatpush1.msra.mxu0 0.0
    %226 = vmatprep.subr.mxu0 0.0
    %227 = vmatpush1.msra.mxu0 0.0
    %228 = vmatprep.subr.mxu0 0.0
    %229 = vmatpush1.msra.mxu0 0.0
    %230 = vmatprep.subr.mxu0 0.0
    %231 = vmatpush1.msra.mxu0 0.0
    %232 = vmatprep.subr.mxu0 0.0
    %233 = vmatpush1.msra.mxu0 0.0
    %234 = vmatprep.subr.mxu0 0.0
    %235 = vmatpush1.msra.mxu0 0.0
    %236 = vmatprep.subr.mxu0 0.0
    %237 = vmatpush1.msra.mxu0 0.0
    %238 = vmatprep.subr.mxu0 0.0
    %239 = vmatpush1.msra.mxu0 0.0
    %240 = vmatprep.subr.mxu0 0.0
    %241 = vmatpush1.msra.mxu0 0.0
    %242 = vmatprep.subr.mxu0 0.0
    %243 = vmatpush1.msra.mxu0 0.0
    %244 = vmatprep.subr.mxu0 0.0
    %245 = vmatpush1.msra.mxu0 0.0
    %246 = vmatprep.subr.mxu0 0.0
    %247 = vmatpush1.msra.mxu0 0.0
    %248 = vmatprep.subr.mxu0 0.0
    %249 = vmatpush1.msra.mxu0 0.0
    %250 = vmatprep.subr.mxu0 0.0
    %251 = vmatpush1.msra.mxu0 0.0
    %252 = vmatprep.subr.mxu0 0.0
    %253 = vmatpush1.msra.mxu0 0.0
    %254 = vmatprep.subr.mxu0 0.0
    %255 = vmatpush1.msra.mxu0 0.0
    %256 = vmatprep.subr.mxu0 0.0
    %257 = vmatpush1.msra.mxu0 0.0
    %258 = vmatprep.subr.mxu0 0.0
    %259 = vmatpush1.msra.mxu0 0.0
    %260 = vmatprep.subr.mxu0 0.0
    %261 = vmatpush1.msra.mxu0 0.0
    %262 = vmatprep.subr.mxu0 0.0
    %263 = vmatpush1.msra.mxu0 0.0
    %264 = vmatprep.subr.mxu0 0.0
    %265 = vmatpush1.msra.mxu0 0.0
    %266 = vmatprep.subr.mxu0 0.0
    %267 = vmatpush1.msra.mxu0 0.0
    %268 = vmatprep.subr.mxu0 0.0
    %269 = vmatpush1.msra.mxu0 0.0
    %270 = vmatprep.subr.mxu0 0.0
    %271 = vmatpush1.msra.mxu0 0.0
    %272 = vmatprep.subr.mxu0 0.0
    %273 = vmatpush1.msra.mxu0 0.0
    %274 = vmatprep.mubr.f32.mxu0 0.0
    %275 = vmatmul.mubr.f32.gmra.mrb[0].mxu0 %v208
    %v276 = vpop.f32.mrb[0].mxu0
    %v277 = vadd.f32 %v202, %v276
    %v278 = vpop.f32.mrb[0].mxu0
    %279 = vdwg.mxu0
    %v280 = vld [vmem:[%s2] sm:$0x3]
    %v281 = vld [vmem:[%s7] sm:$0xff]
    %v282 = vld [vmem:[%s7 + $0x8] sm:$0xff]
    %v283 = vld [vmem:[%s7 + $0x10] sm:$0xff]
    %v284 = vld [vmem:[%s7 + $0x18] sm:$0xff]
    %v285 = vld [vmem:[%s8] sm:$0x1]
    %v287 = vlaneseq
    %v288 = vshrl.u32 %v287, 7
    %v289 = vsub.s32 0, %v288
    %v290 = vrot.slane %v285, %v289
    %v293 = vsel %vm174, %v280, 0
    %295 = vmatprep.subr.mxu0 0.0
    %296 = vmatpush1.msra.mxu0 %v281
    %297 = vmatprep.subr.mxu0 0.0
    %298 = vmatpush1.msra.mxu0 %v282
    %299 = vmatprep.subr.mxu0 0.0
    %300 = vmatpush1.msra.mxu0 %v283
    %301 = vmatprep.subr.mxu0 0.0
    %302 = vmatpush1.msra.mxu0 %v284
    %303 = vmatprep.subr.mxu0 0.0
    %304 = vmatpush1.msra.mxu0 0.0
    %305 = vmatprep.subr.mxu0 0.0
    %306 = vmatpush1.msra.mxu0 0.0
    %307 = vmatprep.subr.mxu0 0.0
    %308 = vmatpush1.msra.mxu0 0.0
    %309 = vmatprep.subr.mxu0 0.0
    %310 = vmatpush1.msra.mxu0 0.0
    %311 = vmatprep.subr.mxu0 0.0
    %312 = vmatpush1.msra.mxu0 0.0
    %313 = vmatprep.subr.mxu0 0.0
    %314 = vmatpush1.msra.mxu0 0.0
    %315 = vmatprep.subr.mxu0 0.0
    %316 = vmatpush1.msra.mxu0 0.0
    %317 = vmatprep.subr.mxu0 0.0
    %318 = vmatpush1.msra.mxu0 0.0
    %319 = vmatprep.subr.mxu0 0.0
    %320 = vmatpush1.msra.mxu0 0.0
    %321 = vmatprep.subr.mxu0 0.0
    %322 = vmatpush1.msra.mxu0 0.0
    %323 = vmatprep.subr.mxu0 0.0
    %324 = vmatpush1.msra.mxu0 0.0
    %325 = vmatprep.subr.mxu0 0.0
    %326 = vmatpush1.msra.mxu0 0.0
    %327 = vmatprep.subr.mxu0 0.0
    %328 = vmatpush1.msra.mxu0 0.0
    %329 = vmatprep.subr.mxu0 0.0
    %330 = vmatpush1.msra.mxu0 0.0
    %331 = vmatprep.subr.mxu0 0.0
    %332 = vmatpush1.msra.mxu0 0.0
    %333 = vmatprep.subr.mxu0 0.0
    %334 = vmatpush1.msra.mxu0 0.0
    %335 = vmatprep.subr.mxu0 0.0
    %336 = vmatpush1.msra.mxu0 0.0
    %337 = vmatprep.subr.mxu0 0.0
    %338 = vmatpush1.msra.mxu0 0.0
    %339 = vmatprep.subr.mxu0 0.0
    %340 = vmatpush1.msra.mxu0 0.0
    %341 = vmatprep.subr.mxu0 0.0
    %342 = vmatpush1.msra.mxu0 0.0
    %343 = vmatprep.subr.mxu0 0.0
    %344 = vmatpush1.msra.mxu0 0.0
    %345 = vmatprep.subr.mxu0 0.0
    %346 = vmatpush1.msra.mxu0 0.0
    %347 = vmatprep.subr.mxu0 0.0
    %348 = vmatpush1.msra.mxu0 0.0
    %349 = vmatprep.subr.mxu0 0.0
    %350 = vmatpush1.msra.mxu0 0.0
    %351 = vmatprep.subr.mxu0 0.0
    %352 = vmatpush1.msra.mxu0 0.0
    %353 = vmatprep.subr.mxu0 0.0
    %354 = vmatpush1.msra.mxu0 0.0
    %355 = vmatprep.subr.mxu0 0.0
    %356 = vmatpush1.msra.mxu0 0.0
    %357 = vmatprep.subr.mxu0 0.0
    %358 = vmatpush1.msra.mxu0 0.0
    %359 = vmatprep.mubr.f32.mxu0 0.0
    %360 = vmatmul.mubr.f32.gmra.mrb[0].mxu0 %v293
    %v361 = vpop.f32.mrb[0].mxu0
    %v362 = vadd.f32 %v290, %v361
    %v363 = vpop.f32.mrb[0].mxu0
    %364 = vdwg.mxu0
    %v365 = vld [vmem:[%s9] sm:$0xff]
    %v366 = vld [vmem:[%s9 + $0x8] sm:$0xff]
    %v367 = vld [vmem:[%s9 + $0x10] sm:$0xff]
    %v368 = vld [vmem:[%s9 + $0x18] sm:$0xff]
    %v369 = vld [vmem:[%s1] sm:$0x3]
    %v370 = vld [vmem:[%s9 + $0x20] sm:$0xff]
    %v371 = vld [vmem:[%s9 + $0x28] sm:$0xff]
    %vm372 = vcmask 130048
    %v374 = vsel %vm372, %v369, 0
    %376 = vmatprep.subr.mxu0 0.0
    %377 = vmatpush1.msra.mxu0 %v370
    %378 = vmatprep.subr.mxu0 0.0
    %379 = vmatpush1.msra.mxu0 %v371
    %380 = vmatprep.subr.mxu0 0.0
    %381 = vmatpush1.msra.mxu0 0.0
    %382 = vmatprep.subr.mxu0 0.0
    %383 = vmatpush1.msra.mxu0 0.0
    %384 = vmatprep.subr.mxu0 0.0
    %385 = vmatpush1.msra.mxu0 0.0
    %386 = vmatprep.subr.mxu0 0.0
    %387 = vmatpush1.msra.mxu0 0.0
    %388 = vmatprep.subr.mxu0 0.0
    %389 = vmatpush1.msra.mxu0 0.0
    %390 = vmatprep.subr.mxu0 0.0
    %391 = vmatpush1.msra.mxu0 0.0
    %392 = vmatprep.subr.mxu0 0.0
    %393 = vmatpush1.msra.mxu0 0.0
    %394 = vmatprep.subr.mxu0 0.0
    %395 = vmatpush1.msra.mxu0 0.0
    %396 = vmatprep.subr.mxu0 0.0
    %397 = vmatpush1.msra.mxu0 0.0
    %398 = vmatprep.subr.mxu0 0.0
    %399 = vmatpush1.msra.mxu0 0.0
    %400 = vmatprep.subr.mxu0 0.0
    %401 = vmatpush1.msra.mxu0 0.0
    %402 = vmatprep.subr.mxu0 0.0
    %403 = vmatpush1.msra.mxu0 0.0
    %404 = vmatprep.subr.mxu0 0.0
    %405 = vmatpush1.msra.mxu0 0.0
    %406 = vmatprep.subr.mxu0 0.0
    %407 = vmatpush1.msra.mxu0 0.0
    %408 = vmatprep.subr.mxu0 0.0
    %409 = vmatpush1.msra.mxu0 0.0
    %410 = vmatprep.subr.mxu0 0.0
    %411 = vmatpush1.msra.mxu0 0.0
    %412 = vmatprep.subr.mxu0 0.0
    %413 = vmatpush1.msra.mxu0 0.0
    %414 = vmatprep.subr.mxu0 0.0
    %415 = vmatpush1.msra.mxu0 0.0
    %416 = vmatprep.subr.mxu0 0.0
    %417 = vmatpush1.msra.mxu0 0.0
    %418 = vmatprep.subr.mxu0 0.0
    %419 = vmatpush1.msra.mxu0 0.0
    %420 = vmatprep.subr.mxu0 0.0
    %421 = vmatpush1.msra.mxu0 0.0
    %422 = vmatprep.subr.mxu0 0.0
    %423 = vmatpush1.msra.mxu0 0.0
    %424 = vmatprep.subr.mxu0 0.0
    %425 = vmatpush1.msra.mxu0 0.0
    %426 = vmatprep.subr.mxu0 0.0
    %427 = vmatpush1.msra.mxu0 0.0
    %428 = vmatprep.subr.mxu0 0.0
    %429 = vmatpush1.msra.mxu0 0.0
    %430 = vmatprep.subr.mxu0 0.0
    %431 = vmatpush1.msra.mxu0 0.0
    %432 = vmatprep.subr.mxu0 0.0
    %433 = vmatpush1.msra.mxu0 0.0
    %434 = vmatprep.subr.mxu0 0.0
    %435 = vmatpush1.msra.mxu0 0.0
    %436 = vmatprep.subr.mxu0 0.0
    %437 = vmatpush1.msra.mxu0 0.0
    %438 = vmatprep.subr.mxu0 0.0
    %439 = vmatpush1.msra.mxu0 0.0
    %440 = vmatprep.mubr.f32.mxu0 0.0
    %441 = vmatmul.mubr.f32.gmra.mrb[0].mxu0 %v374
    %v442 = vpop.f32.mrb[0].mxu0
    %v443 = vadd.f32 0.0, %v442
    %v444 = vpop.f32.mrb[0].mxu0
    %445 = vdwg.mxu0
    %v447 = vsel %vm174, %v277, 0
    %449 = vmatprep.subr.mxu0 0.0
    %450 = vmatpush1.msra.mxu0 %v365
    %451 = vmatprep.subr.mxu0 0.0
    %452 = vmatpush1.msra.mxu0 %v366
    %453 = vmatprep.subr.mxu0 0.0
    %454 = vmatpush1.msra.mxu0 %v367
    %455 = vmatprep.subr.mxu0 0.0
    %456 = vmatpush1.msra.mxu0 %v368
    %457 = vmatprep.subr.mxu0 0.0
    %458 = vmatpush1.msra.mxu0 0.0
    %459 = vmatprep.subr.mxu0 0.0
    %460 = vmatpush1.msra.mxu0 0.0
    %461 = vmatprep.subr.mxu0 0.0
    %462 = vmatpush1.msra.mxu0 0.0
    %463 = vmatprep.subr.mxu0 0.0
    %464 = vmatpush1.msra.mxu0 0.0
    %465 = vmatprep.subr.mxu0 0.0
    %466 = vmatpush1.msra.mxu0 0.0
    %467 = vmatprep.subr.mxu0 0.0
    %468 = vmatpush1.msra.mxu0 0.0
    %469 = vmatprep.subr.mxu0 0.0
    %470 = vmatpush1.msra.mxu0 0.0
    %471 = vmatprep.subr.mxu0 0.0
    %472 = vmatpush1.msra.mxu0 0.0
    %473 = vmatprep.subr.mxu0 0.0
    %474 = vmatpush1.msra.mxu0 0.0
    %475 = vmatprep.subr.mxu0 0.0
    %476 = vmatpush1.msra.mxu0 0.0
    %477 = vmatprep.subr.mxu0 0.0
    %478 = vmatpush1.msra.mxu0 0.0
    %479 = vmatprep.subr.mxu0 0.0
    %480 = vmatpush1.msra.mxu0 0.0
    %481 = vmatprep.subr.mxu0 0.0
    %482 = vmatpush1.msra.mxu0 0.0
    %483 = vmatprep.subr.mxu0 0.0
    %484 = vmatpush1.msra.mxu0 0.0
    %485 = vmatprep.subr.mxu0 0.0
    %486 = vmatpush1.msra.mxu0 0.0
    %487 = vmatprep.subr.mxu0 0.0
    %488 = vmatpush1.msra.mxu0 0.0
    %489 = vmatprep.subr.mxu0 0.0
    %490 = vmatpush1.msra.mxu0 0.0
    %491 = vmatprep.subr.mxu0 0.0
    %492 = vmatpush1.msra.mxu0 0.0
    %493 = vmatprep.subr.mxu0 0.0
    %494 = vmatpush1.msra.mxu0 0.0
    %495 = vmatprep.subr.mxu0 0.0
    %496 = vmatpush1.msra.mxu0 0.0
    %497 = vmatprep.subr.mxu0 0.0
    %498 = vmatpush1.msra.mxu0 0.0
    %499 = vmatprep.subr.mxu0 0.0
    %500 = vmatpush1.msra.mxu0 0.0
    %501 = vmatprep.subr.mxu0 0.0
    %502 = vmatpush1.msra.mxu0 0.0
    %503 = vmatprep.subr.mxu0 0.0
    %504 = vmatpush1.msra.mxu0 0.0
    %505 = vmatprep.subr.mxu0 0.0
    %506 = vmatpush1.msra.mxu0 0.0
    %507 = vmatprep.subr.mxu0 0.0
    %508 = vmatpush1.msra.mxu0 0.0
    %509 = vmatprep.subr.mxu0 0.0
    %510 = vmatpush1.msra.mxu0 0.0
    %511 = vmatprep.subr.mxu0 0.0
    %512 = vmatpush1.msra.mxu0 0.0
    %513 = vmatprep.mubr.f32.mxu0 0.0
    %514 = vmatmul.mubr.f32.gmra.mrb[0].mxu0 %v447
    %v515 = vpop.f32.mrb[0].mxu0
    %v516 = vadd.f32 %v443, %v515
    %v517 = vpop.f32.mrb[0].mxu0
    %518 = vdwg.mxu0
    %v519 = vld [vmem:[%s9 + $0x30] sm:$0xff]
    %v520 = vld [vmem:[%s9 + $0x38] sm:$0xff]
    %v522 = vsel %vm372, %v362, 0
    %524 = vmatprep.subr.mxu0 0.0
    %525 = vmatpush1.msra.mxu0 %v519
    %526 = vmatprep.subr.mxu0 0.0
    %527 = vmatpush1.msra.mxu0 %v520
    %528 = vmatprep.subr.mxu0 0.0
    %529 = vmatpush1.msra.mxu0 0.0
    %530 = vmatprep.subr.mxu0 0.0
    %531 = vmatpush1.msra.mxu0 0.0
    %532 = vmatprep.subr.mxu0 0.0
    %533 = vmatpush1.msra.mxu0 0.0
    %534 = vmatprep.subr.mxu0 0.0
    %535 = vmatpush1.msra.mxu0 0.0
    %536 = vmatprep.subr.mxu0 0.0
    %537 = vmatpush1.msra.mxu0 0.0
    %538 = vmatprep.subr.mxu0 0.0
    %539 = vmatpush1.msra.mxu0 0.0
    %540 = vmatprep.subr.mxu0 0.0
    %541 = vmatpush1.msra.mxu0 0.0
    %542 = vmatprep.subr.mxu0 0.0
    %543 = vmatpush1.msra.mxu0 0.0
    %544 = vmatprep.subr.mxu0 0.0
    %545 = vmatpush1.msra.mxu0 0.0
    %546 = vmatprep.subr.mxu0 0.0
    %547 = vmatpush1.msra.mxu0 0.0
    %548 = vmatprep.subr.mxu0 0.0
    %549 = vmatpush1.msra.mxu0 0.0
    %550 = vmatprep.subr.mxu0 0.0
    %551 = vmatpush1.msra.mxu0 0.0
    %552 = vmatprep.subr.mxu0 0.0
    %553 = vmatpush1.msra.mxu0 0.0
    %554 = vmatprep.subr.mxu0 0.0
    %555 = vmatpush1.msra.mxu0 0.0
    %556 = vmatprep.subr.mxu0 0.0
    %557 = vmatpush1.msra.mxu0 0.0
    %558 = vmatprep.subr.mxu0 0.0
    %559 = vmatpush1.msra.mxu0 0.0
    %560 = vmatprep.subr.mxu0 0.0
    %561 = vmatpush1.msra.mxu0 0.0
    %562 = vmatprep.subr.mxu0 0.0
    %563 = vmatpush1.msra.mxu0 0.0
    %564 = vmatprep.subr.mxu0 0.0
    %565 = vmatpush1.msra.mxu0 0.0
    %566 = vmatprep.subr.mxu0 0.0
    %567 = vmatpush1.msra.mxu0 0.0
    %568 = vmatprep.subr.mxu0 0.0
    %569 = vmatpush1.msra.mxu0 0.0
    %570 = vmatprep.subr.mxu0 0.0
    %571 = vmatpush1.msra.mxu0 0.0
    %572 = vmatprep.subr.mxu0 0.0
    %573 = vmatpush1.msra.mxu0 0.0
    %574 = vmatprep.subr.mxu0 0.0
    %575 = vmatpush1.msra.mxu0 0.0
    %576 = vmatprep.subr.mxu0 0.0
    %577 = vmatpush1.msra.mxu0 0.0
    %578 = vmatprep.subr.mxu0 0.0
    %579 = vmatpush1.msra.mxu0 0.0
    %580 = vmatprep.subr.mxu0 0.0
    %581 = vmatpush1.msra.mxu0 0.0
    %582 = vmatprep.subr.mxu0 0.0
    %583 = vmatpush1.msra.mxu0 0.0
    %584 = vmatprep.subr.mxu0 0.0
    %585 = vmatpush1.msra.mxu0 0.0
    %586 = vmatprep.subr.mxu0 0.0
    %587 = vmatpush1.msra.mxu0 0.0
    %588 = vmatprep.mubr.f32.mxu0 0.0
    %589 = vmatmul.mubr.f32.gmra.mrb[0].mxu0 %v522
    %v590 = vpop.f32.mrb[0].mxu0
    %v591 = vadd.f32 0.0, %v590
    %v592 = vpop.f32.mrb[0].mxu0
    %593 = vdwg.mxu0
    %v594 = vadd.f32 %v516, %v591
    %v595 = vld [vmem:[%s10] sm:$0x1]
    %v597 = vlaneseq
    %v598 = vshrl.u32 %v597, 7
    %v599 = vsub.s32 0, %v598
    %v600 = vrot.slane %v595, %v599
    %v602 = vadd.f32 %v594, %v600
    %v603 = vmax.f32 %v602, 0.0
    %v604 = vld [vmem:[%s11] sm:$0xff]
    %v605 = vld [vmem:[%s11 + $0x8] sm:$0xff]
    %v606 = vld [vmem:[%s11 + $0x10] sm:$0xff]
    %v607 = vld [vmem:[%s11 + $0x18] sm:$0xff]
    %v608 = vld [vmem:[%s12] sm:$0x1]
    %v610 = vlaneseq
    %v611 = vshrl.u32 %v610, 7
    %v612 = vsub.s32 0, %v611
    %v613 = vrot.slane %v608, %v612
    %v616 = vsel %vm174, %v603, 0
    %618 = vmatprep.subr.mxu0 0.0
    %619 = vmatpush1.msra.mxu0 %v604
    %620 = vmatprep.subr.mxu0 0.0
    %621 = vmatpush1.msra.mxu0 %v605
    %622 = vmatprep.subr.mxu0 0.0
    %623 = vmatpush1.msra.mxu0 %v606
    %624 = vmatprep.subr.mxu0 0.0
    %625 = vmatpush1.msra.mxu0 %v607
    %626 = vmatprep.subr.mxu0 0.0
    %627 = vmatpush1.msra.mxu0 0.0
    %628 = vmatprep.subr.mxu0 0.0
    %629 = vmatpush1.msra.mxu0 0.0
    %630 = vmatprep.subr.mxu0 0.0
    %631 = vmatpush1.msra.mxu0 0.0
    %632 = vmatprep.subr.mxu0 0.0
    %633 = vmatpush1.msra.mxu0 0.0
    %634 = vmatprep.subr.mxu0 0.0
    %635 = vmatpush1.msra.mxu0 0.0
    %636 = vmatprep.subr.mxu0 0.0
    %637 = vmatpush1.msra.mxu0 0.0
    %638 = vmatprep.subr.mxu0 0.0
    %639 = vmatpush1.msra.mxu0 0.0
    %640 = vmatprep.subr.mxu0 0.0
    %641 = vmatpush1.msra.mxu0 0.0
    %642 = vmatprep.subr.mxu0 0.0
    %643 = vmatpush1.msra.mxu0 0.0
    %644 = vmatprep.subr.mxu0 0.0
    %645 = vmatpush1.msra.mxu0 0.0
    %646 = vmatprep.subr.mxu0 0.0
    %647 = vmatpush1.msra.mxu0 0.0
    %648 = vmatprep.subr.mxu0 0.0
    %649 = vmatpush1.msra.mxu0 0.0
    %650 = vmatprep.subr.mxu0 0.0
    %651 = vmatpush1.msra.mxu0 0.0
    %652 = vmatprep.subr.mxu0 0.0
    %653 = vmatpush1.msra.mxu0 0.0
    %654 = vmatprep.subr.mxu0 0.0
    %655 = vmatpush1.msra.mxu0 0.0
    %656 = vmatprep.subr.mxu0 0.0
    %657 = vmatpush1.msra.mxu0 0.0
    %658 = vmatprep.subr.mxu0 0.0
    %659 = vmatpush1.msra.mxu0 0.0
    %660 = vmatprep.subr.mxu0 0.0
    %661 = vmatpush1.msra.mxu0 0.0
    %662 = vmatprep.subr.mxu0 0.0
    %663 = vmatpush1.msra.mxu0 0.0
    %664 = vmatprep.subr.mxu0 0.0
    %665 = vmatpush1.msra.mxu0 0.0
    %666 = vmatprep.subr.mxu0 0.0
    %667 = vmatpush1.msra.mxu0 0.0
    %668 = vmatprep.subr.mxu0 0.0
    %669 = vmatpush1.msra.mxu0 0.0
    %670 = vmatprep.subr.mxu0 0.0
    %671 = vmatpush1.msra.mxu0 0.0
    %672 = vmatprep.subr.mxu0 0.0
    %673 = vmatpush1.msra.mxu0 0.0
    %674 = vmatprep.subr.mxu0 0.0
    %675 = vmatpush1.msra.mxu0 0.0
    %676 = vmatprep.subr.mxu0 0.0
    %677 = vmatpush1.msra.mxu0 0.0
    %678 = vmatprep.subr.mxu0 0.0
    %679 = vmatpush1.msra.mxu0 0.0
    %680 = vmatprep.subr.mxu0 0.0
    %681 = vmatpush1.msra.mxu0 0.0
    %682 = vmatprep.mubr.f32.mxu0 0.0
    %683 = vmatmul.mubr.f32.gmra.mrb[0].mxu0 %v616
    %v684 = vpop.f32.mrb[0].mxu0
    %v685 = vadd.f32 %v613, %v684
    %v686 = vpop.f32.mrb[0].mxu0
    %687 = vdwg.mxu0
    %688 = vst [vmem:[#allocation2] sm:$0x3] %v685
    // Predicated region
    $region54: #{tpu_custom_call.1} parent=1 // pred_check
      _
    $region55: #{tpu_custom_call.1} parent=1 // pred_check_branch
      %690 = sbr.rel (0) target = $region57
    $region56: #{tpu_custom_call.1} parent=1 // pred_region
      %s692 = ssub.s32 32, 32
      %693 = vsyncadd [#allocation3], %s692
      %s695 = sshll.u32 [#allocation2], 4
      %s696 = int_to_ptr.vmem [resolvable:$true] %s695
      %698 = dma.vmem_to_hbm [thread:$0]  %s696, 32, %s13, [#allocation3]
    $region57: #{tpu_custom_call.1} parent=1 // pred_fallthru
      _
    // Predicated region
    $region58: #{tpu_custom_call.1} parent=1 // pred_check
      _
    $region59: #{tpu_custom_call.1} parent=1 // pred_check_branch
      %700 = sbr.rel (0) target = $region61
    $region60: #{tpu_custom_call.1} parent=1 // pred_region
      %701 = dma.done [#allocation3], 32
    $region61: #{tpu_custom_call.1} parent=1 // pred_fallthru
      _
    %702 = vsyncpa [#allocation3], 1

</llo_original>
